<compile_context>
chip_gen: v7x
topology: tpu7x:2x2x1
jax: 0.10.0
libtpu: 0.0.40
codegen_flags: <defaults>
</compile_context>

<pallas_src>
import numpy as np
import jax
import jax.numpy as jnp
from jax.experimental import pallas as pl
from jax.experimental.pallas import tpu as pltpu


# -----------------------------------------------------------------------------
# Kernels
# -----------------------------------------------------------------------------
def _add_pe_flat_kernel(x_ref, pe_ref, o_ref):
    """Flat layout: x_ref/pe_ref/o_ref are (block_s, B*D); plain VPU add."""
    o_ref[...] = (x_ref[...] + pe_ref[...]).astype(o_ref.dtype)


def _add_pe_bcast_kernel(x_ref, pe_ref, o_ref):
    """3D layout: x_ref/o_ref (block_s, B, D); pe_ref (block_s, D), bcast over B."""
    pe = pe_ref[...]
    o_ref[...] = (x_ref[...] + pe[:, None, :]).astype(o_ref.dtype)


# -----------------------------------------------------------------------------
# Fixed sin/cos positional-encoding tables (PyTorch buffer equivalents)
# -----------------------------------------------------------------------------
def positional_encoding_table(max_len, d_model, dtype=jnp.float32):
    """(max_len, d_model) sin/cos table, stored in the model dtype."""
    assert d_model % 2 == 0, "classic sin/cos recipe requires even d_model"
    position = np.arange(max_len, dtype=np.float32)[:, None]
    div_term = np.exp(
        np.arange(0, d_model, 2, dtype=np.float32) * (-np.log(10000.0) / d_model)
    )
    pe = np.zeros((max_len, d_model), dtype=np.float32)
    pe[:, 0::2] = np.sin(position * div_term)
    pe[:, 1::2] = np.cos(position * div_term)
    return jnp.asarray(pe, dtype=dtype)


def tile_pe_for_batch(pe, batch):
    """Precompute (once, register_buffer-style) the batch-tiled table
    (max_len, d_model) -> (max_len, batch * d_model) so that the flat-layout
    kernel is a pure lane-dense elementwise add with no in-kernel broadcast."""
    max_len, d_model = pe.shape
    return jnp.broadcast_to(
        pe[:, None, :], (max_len, batch, d_model)
    ).reshape(max_len, batch * d_model)


# -----------------------------------------------------------------------------
# Block-size selection from a VMEM byte budget
# -----------------------------------------------------------------------------
def _pick_block_rows(n_rows, bytes_per_row, *, vmem_budget_bytes,
                     target_rows=512, min_grid_steps=4):
    """bytes_per_row: single-buffered VMEM bytes per sequence row for
    (x tile + out tile + pe tile).  Pallas double-buffers each (x2)."""
    db_bytes_per_row = 2 * bytes_per_row

    # Tiny working set: a single grid step is optimal (no pipeline to build).
    if n_rows * db_bytes_per_row <= 512 * 1024:
        return n_rows

    budget_rows = max(8, vmem_budget_bytes // db_bytes_per_row)
    # >= min_grid_steps steps so the pipeline overlaps DMA-in / compute /
    # DMA-out; 256-512 rows/tile is the measured sweet spot for f32 adds.
    block = min(target_rows, budget_rows, max(8, -(-n_rows // min_grid_steps)))
    block = max(8, (block // 8) * 8)          # keep sublane dim a multiple of 8
    block = min(block, n_rows)

    # Prefer an even tile count so the "parallel" grid axis splits evenly
    # across v7x's two TensorCores.
    steps = -(-n_rows // block)
    if steps > 1 and steps % 2 == 1:
        alt = max(8, ((-(-n_rows // (steps + 1))) + 7) // 8 * 8)
        if alt < n_rows and (-(-n_rows // alt)) % 2 == 0:
            block = alt
    return block


# -----------------------------------------------------------------------------
# Wrapper
# -----------------------------------------------------------------------------
def add_positional_encoding(x, pe, *, pe_flat=None,
                            vmem_budget_bytes=8 * 1024 * 1024,
                            donate_x=False):
    """x: (S, B, D); pe: (max_len, D) with max_len >= S.
    pe_flat: optional precomputed (max_len, B*D) batch-tiled table (used on the
    small-batch fast path; build it once with tile_pe_for_batch).
    Returns x + pe[:S] broadcast over the batch dimension."""
    S, B, D = x.shape
    max_len, D2 = pe.shape
    assert D == D2 and S <= max_len, (x.shape, pe.shape)

    if pe.dtype != x.dtype:          # ideally stored in x.dtype at construction
        pe = pe.astype(x.dtype)

    itemsize = jnp.dtype(x.dtype).itemsize
    min_sublane = {4: 8, 2: 16, 1: 32}.get(itemsize, 8)

    cparams = pltpu.CompilerParams(
        dimension_semantics=("parallel",),
        vmem_limit_bytes=32 * 1024 * 1024,
    )
    io_alias = {0: 0} if donate_x else {}

    use_flat = (B < min_sublane) and ((B * D) % 128 == 0)

    if use_flat:
        # --- small-batch path: flat (S, B*D) slab, fully sublane/lane dense ---
        BD = B * D
        if pe_flat is None:
            pe_flat = tile_pe_for_batch(pe, B)   # prefer precomputing at setup
        if pe_flat.dtype != x.dtype:
            pe_flat = pe_flat.astype(x.dtype)
        assert pe_flat.shape == (max_len, BD), pe_flat.shape

        x_flat = x.reshape(S, BD)                # contiguous reshape: free
        row_bytes = 3 * BD * itemsize            # x + out + pe per row
        block = _pick_block_rows(S, row_bytes, vmem_budget_bytes=vmem_budget_bytes)
        grid = (pl.cdiv(S, block),)

        # Ragged last tile: give pe the same leading extent as x so the edge
        # handling of both operands is identical.  Non-ragged (common) case
        # folds pe[:S] into the BlockSpec DMA with no extra copy.
        pe_arg = pe_flat if (S % block) == 0 else pe_flat[:S]

        out = pl.pallas_call(
            _add_pe_flat_kernel,
            out_shape=jax.ShapeDtypeStruct((S, BD), x.dtype),
            grid=grid,
            in_specs=[
                pl.BlockSpec((block, BD), lambda i: (i, 0)),
                pl.BlockSpec((block, BD), lambda i: (i, 0)),
            ],
            out_specs=pl.BlockSpec((block, BD), lambda i: (i, 0)),
            compiler_params=cparams,
            input_output_aliases=io_alias,
        )(x_flat, pe_arg)
        return out.reshape(S, B, D)

    # --- large-batch path: (block_s, B, D) blocks, pe broadcast in-kernel ---
    # (pe HBM traffic is x_traffic / B here, and B >= min_sublane keeps the
    #  (B, D) sublane/lane tile dense.)
    row_bytes = (2 * B * D + D) * itemsize
    block = _pick_block_rows(S, row_bytes, vmem_budget_bytes=vmem_budget_bytes)
    grid = (pl.cdiv(S, block),)
    pe_arg = pe if (S % block) == 0 else pe[:S]

    return pl.pallas_call(
        _add_pe_bcast_kernel,
        out_shape=jax.ShapeDtypeStruct((S, B, D), x.dtype),
        grid=grid,
        in_specs=[
            pl.BlockSpec((block, B, D), lambda i: (i, 0, 0)),
            pl.BlockSpec((block, D), lambda i: (i, 0)),
        ],
        out_specs=pl.BlockSpec((block, B, D), lambda i: (i, 0, 0)),
        compiler_params=cparams,
        input_output_aliases=io_alias,
    )(x, pe_arg)


# -----------------------------------------------------------------------------
# Demo / self-check
# -----------------------------------------------------------------------------
if __name__ == "__main__":
    key = jax.random.PRNGKey(0)

    # 1) Small shapes matching the module (flat small-batch path, single tile).
    S, B, d_model, max_len = 8, 2, 128, 16
    k1, k2, k3 = jax.random.split(key, 3)
    x = jax.random.normal(k1, (S, B, d_model), dtype=jnp.float32)
    pe = positional_encoding_table(max_len, d_model, dtype=x.dtype)
    pe_flat = tile_pe_for_batch(pe, B)          # precomputed once, like register_buffer
    out = jax.block_until_ready(add_positional_encoding(x, pe, pe_flat=pe_flat))
    ref = x + pe[:S][:, None, :]
    assert out.shape == (S, B, d_model)
    assert bool(jnp.all(jnp.isfinite(out)))
    assert bool(jnp.allclose(out, ref, atol=1e-6, rtol=1e-6))

    # 2) Longer sequence: exercises the multi-tile pipelined grid (4 even steps).
    S2, max_len2 = 1024, 1280
    x2 = jax.random.normal(k2, (S2, B, d_model), dtype=jnp.float32)
    pe2 = positional_encoding_table(max_len2, d_model, dtype=x2.dtype)
    pe2_flat = tile_pe_for_batch(pe2, B)
    out2 = jax.block_until_ready(add_positional_encoding(x2, pe2, pe_flat=pe2_flat))
    ref2 = x2 + pe2[:S2][:, None, :]
    assert bool(jnp.allclose(out2, ref2, atol=1e-6, rtol=1e-6))

    # 3) Batch >= 8: exercises the sublane-dense broadcast (3D) path.
    S3, B3, max_len3 = 16, 8, 32
    x3 = jax.random.normal(k3, (S3, B3, d_model), dtype=jnp.float32)
    pe3 = positional_encoding_table(max_len3, d_model, dtype=x3.dtype)
    out3 = jax.block_until_ready(add_positional_encoding(x3, pe3))
    ref3 = x3 + pe3[:S3][:, None, :]
    assert bool(jnp.allclose(out3, ref3, atol=1e-6, rtol=1e-6))

    print("KERNEL_OK")
</pallas_src>

<mosaic_0001>
module attributes {stable_mosaic.version = 11 : i64} {
  func.func @_add_pe_flat_kernel(%arg0: i32, %arg1: memref<8x256xf32, #tpu.memory_space<vmem>>, %arg2: memref<8x256xf32, #tpu.memory_space<vmem>>, %arg3: memref<8x256xf32, #tpu.memory_space<vmem>>) attributes {dimension_semantics = [#tpu.dimension_semantics<parallel>], iteration_bounds = array<i64: 1>, scalar_prefetch = 0 : i64, scratch_operands = 0 : i64, tpu.core_type = #tpu.core_type<tc>, window_params = [{transform_indices = @transform_0, window_bounds = array<i64: 8, 256>}, {transform_indices = @transform_1, window_bounds = array<i64: 8, 256>}, {transform_indices = @transform_2, window_bounds = array<i64: 8, 256>}]} {
    %c0 = arith.constant 0 : index
    %c0_0 = arith.constant 0 : index
    %0 = vector.load %arg1[%c0, %c0_0] : memref<8x256xf32, #tpu.memory_space<vmem>>, vector<8x256xf32>
    %c0_1 = arith.constant 0 : index
    %c0_2 = arith.constant 0 : index
    %1 = vector.load %arg2[%c0_1, %c0_2] : memref<8x256xf32, #tpu.memory_space<vmem>>, vector<8x256xf32>
    %2 = arith.addf %0, %1 : vector<8x256xf32>
    %c0_3 = arith.constant 0 : index
    %c0_4 = arith.constant 0 : index
    %3 = vector.load %arg3[%c0_3, %c0_4] : memref<8x256xf32, #tpu.memory_space<vmem>>, vector<8x256xf32>
    tpu.vector_store %arg3[%c0_3, %c0_4], %2 {strides = array<i32>} : memref<8x256xf32, #tpu.memory_space<vmem>>, vector<8x256xf32>,
    return
  }
  func.func @transform_0(%arg0: i32) -> (i32, i32) {
    %c0_i32 = arith.constant 0 : i32
    %c0_i32_0 = arith.constant 0 : i32
    return %arg0, %c0_i32 : i32, i32
  }
  func.func @transform_1(%arg0: i32) -> (i32, i32) {
    %c0_i32 = arith.constant 0 : i32
    %c0_i32_0 = arith.constant 0 : i32
    return %arg0, %c0_i32 : i32, i32
  }
  func.func @transform_2(%arg0: i32) -> (i32, i32) {
    %c0_i32 = arith.constant 0 : i32
    %c0_i32_0 = arith.constant 0 : i32
    return %arg0, %c0_i32 : i32, i32
  }
}

</mosaic_0001>

<llo_original>
// kernel: tpu_custom_call.1
$region0: #{tpu_custom_call.1}
  #allocation0 [shape = 'u32[]', space=smem, size = 0x4, offset = 0x4, fixed_abs, tag = 'smem constant byte address 0x4 - core index']
  #allocation1 [shape = 'u32[144,128]{1,0:T(1,128)}', space=vmem, size = 0x12000, scoped, tag = 'internal scratch']
  %s0 = inlined_call_operand.hbm [shape: f32[8,256], index: 0, kind: input, shape index: {}]
  %s1 = inlined_call_operand.hbm [shape: f32[16,256], index: 1, kind: input, shape index: {}]
  %s2 = inlined_call_operand.hbm [shape: f32[8,256], index: 2, kind: output, shape index: {}]
  %s3 = sld [smem:[#allocation0]]
  $region26: #{tpu_custom_call.1} parent=0
    _
  %s5 = ssub.s32 1, %s3
  %s6 = scalar_select 0, %s5, %s3
  $region1: #{tpu_custom_call.1} parent=0
    #allocation2 [shape = 'u8[8192]{0}', space=vmem, size = 0x2000, scoped, tag = 'input window, operand 0, single buffered']
    #allocation3 [shape = 's32[1]{0}', space=sflag, size = 0x4, scoped, tag = 'scoped memory for tpu_custom_call.1']
    #allocation4 [shape = 's32[1]{0}', space=sflag, size = 0x4, scoped, tag = 'scoped memory for tpu_custom_call.1']
    #allocation5 [shape = 'u8[8192]{0}', space=vmem, size = 0x2000, scoped, tag = 'input window, operand 1, single buffered']
    #allocation6 [shape = 's32[1]{0}', space=sflag, size = 0x4, scoped, tag = 'scoped memory for tpu_custom_call.1']
    #allocation7 [shape = 'u8[8192]{0}', space=vmem, size = 0x2000, scoped, tag = 'output window, operand 0, single buffered']
    %7 = vsyncpa [#allocation3], 0
    %8 = vsyncpa [#allocation6], 0
    %9 = vsyncpa [#allocation4], 0
    // Predicated region
    $region2: #{tpu_custom_call.1} parent=1 // pred_check
      _
    $region3: #{tpu_custom_call.1} parent=1 // pred_check_branch
      %11 = sbr.rel (0) target = $region5
    $region4: #{tpu_custom_call.1} parent=1 // pred_region
      %s13 = ssub.s32 256, 256
      %14 = vsyncadd [#allocation3], %s13
      %s16 = sshll.u32 [#allocation2], 4
      %s17 = int_to_ptr.vmem [resolvable:$true] %s16
      %19 = dma.hbm_to_vmem [thread:$0]  %s0, 256, %s17, [#allocation3]
    $region5: #{tpu_custom_call.1} parent=1 // pred_fallthru
      _
    // Predicated region
    $region6: #{tpu_custom_call.1} parent=1 // pred_check
      _
    $region7: #{tpu_custom_call.1} parent=1 // pred_check_branch
      %21 = sbr.rel (0) target = $region9
    $region8: #{tpu_custom_call.1} parent=1 // pred_region
      %s23 = ssub.s32 256, 256
      %24 = vsyncadd [#allocation6], %s23
      %s26 = sshll.u32 [#allocation5], 4
      %s27 = int_to_ptr.vmem [resolvable:$true] %s26
      %29 = dma.hbm_to_vmem [thread:$0]  %s1, 256, %s27, [#allocation6]
    $region9: #{tpu_custom_call.1} parent=1 // pred_fallthru
      _
    // Predicated region
    $region10: #{tpu_custom_call.1} parent=1 // pred_check
      _
    $region11: #{tpu_custom_call.1} parent=1 // pred_check_branch
      %31 = sbr.rel (0) target = $region13
    $region12: #{tpu_custom_call.1} parent=1 // pred_region
      %32 = dma.done [#allocation3], 256
    $region13: #{tpu_custom_call.1} parent=1 // pred_fallthru
      _
    // Predicated region
    $region14: #{tpu_custom_call.1} parent=1 // pred_check
      _
    $region15: #{tpu_custom_call.1} parent=1 // pred_check_branch
      %34 = sbr.rel (0) target = $region17
    $region16: #{tpu_custom_call.1} parent=1 // pred_region
      %35 = dma.done [#allocation6], 256
    $region17: #{tpu_custom_call.1} parent=1 // pred_fallthru
      _
    %v36 = vld [vmem:[#allocation2] sm:$0xff]
    %v37 = vld [vmem:[#allocation2 + $0x8] sm:$0xff]
    %v38 = vld [vmem:[#allocation5] sm:$0xff]
    %v39 = vld [vmem:[#allocation5 + $0x8] sm:$0xff]
    %v40 = vadd.f32 %v36, %v38
    %v41 = vadd.f32 %v37, %v39
    %42 = vst [vmem:[#allocation7] sm:$0xff] %v40
    %43 = vst [vmem:[#allocation7 + $0x8] sm:$0xff] %v41
    // Predicated region
    $region18: #{tpu_custom_call.1} parent=1 // pred_check
      _
    $region19: #{tpu_custom_call.1} parent=1 // pred_check_branch
      %45 = sbr.rel (0) target = $region21
    $region20: #{tpu_custom_call.1} parent=1 // pred_region
      %s47 = ssub.s32 256, 256
      %48 = vsyncadd [#allocation4], %s47
      %s50 = sshll.u32 [#allocation7], 4
      %s51 = int_to_ptr.vmem [resolvable:$true] %s50
      %53 = dma.vmem_to_hbm [thread:$0]  %s51, 256, %s2, [#allocation4]
    $region21: #{tpu_custom_call.1} parent=1 // pred_fallthru
      _
    // Predicated region
    $region22: #{tpu_custom_call.1} parent=1 // pred_check
      _
    $region23: #{tpu_custom_call.1} parent=1 // pred_check_branch
      %55 = sbr.rel (0) target = $region25
    $region24: #{tpu_custom_call.1} parent=1 // pred_region
      %56 = dma.done [#allocation4], 256
    $region25: #{tpu_custom_call.1} parent=1 // pred_fallthru
      _
    %57 = vsyncpa [#allocation3], 1
    %58 = vsyncpa [#allocation6], 1
    %59 = vsyncpa [#allocation4], 1

</llo_original>
